<compile_context>
chip_gen: v6e
topology: v6e:2x2x1
jax: 0.10.0
libtpu: 0.0.40
codegen_flags: <defaults>
</compile_context>

<pallas_src>
import functools

import jax
import jax.numpy as jnp
import numpy as np
from jax.experimental import pallas as pl
from jax.experimental.pallas import tpu as pltpu


# -----------------------------------------------------------------------------
# Pallas kernel: single invocation (no grid). Layers are unrolled at trace time.
# All operands are whole-array VMEM blocks (tiny model; everything fits easily).
# -----------------------------------------------------------------------------
def _gin_kernel(h0_ref, a_ref, w1_ref, w2_ref, lcb_ref, head_ref, out_ref, *,
                n_layers, n_pad, d, b, t, pool_rows):
    a = a_ref[...]                       # (Np, Np) bf16
    h = h0_ref[...]                      # (Np, D)  bf16

    for l in range(n_layers):            # L is static -> fully unrolled
        cl = lcb_ref[l]                  # (Np+8, H) f32: rows [0,Np)=C, row Np=b2'
        # aggregate: A @ h   (edge contribution already folded into C below)
        agg = jnp.dot(a, h, preferred_element_type=jnp.float32)           # (Np, D) f32
        # MLP: Linear(D,2D) -> ReLU -> Linear(2D,D); BN folded into W2/b2,
        # edge aggregate + b1 folded into C (stays f32).
        hid = jnp.dot(agg.astype(jnp.bfloat16), w1_ref[l],
                      preferred_element_type=jnp.float32) + cl[:n_pad]    # (Np, H) f32
        hid = jnp.maximum(hid, 0.0)
        new_h = (jnp.dot(hid.astype(jnp.bfloat16), w2_ref[l],
                         preferred_element_type=jnp.float32)
                 + cl[n_pad:n_pad + 1, :d])                               # (Np, D) f32
        if l < n_layers - 1:             # ReLU on every layer except the last
            new_h = jnp.maximum(new_h, 0.0)
        h = new_h.astype(jnp.bfloat16)

    # readout='mean' (pool rows hold 1/|V_g|, kept f32) + predict Linear (f32)
    head = head_ref[...]                                     # (pool_rows+D+8, Wh) f32
    pool = head[:b, :n_pad]                                  # (B, Np)
    wp = head[pool_rows:pool_rows + d, :t]                   # (D, T)
    bp = head[pool_rows + d:pool_rows + d + 1, :t]           # (1, T)
    g = jnp.dot(pool, h.astype(jnp.float32), preferred_element_type=jnp.float32)
    out_ref[...] = jnp.dot(g, wp, preferred_element_type=jnp.float32) + bp


# -----------------------------------------------------------------------------
# Host-side preparation: fold BN, eliminate E-sized incidence matmuls, fold
# edge-aggregate through the first linear, pack small operands, pad N to the
# bf16 sublane quantum (16), cast MXU operands of the big matmuls to bf16.
# -----------------------------------------------------------------------------
def _ru(v, m):
    return ((v + m - 1) // m) * m


def _pad_to(x, axis, target):
    grow = target - x.shape[axis]
    if grow == 0:
        return x
    widths = [(0, 0)] * x.ndim
    widths[axis] = (0, grow)
    return jnp.pad(x, widths)


def prepare_inputs(h0, A_src, A_dst, e_embs, W1, b1, W2, b2,
                   bn_scale, bn_shift, pool, Wp, bp):
    N, D = h0.shape
    L = W1.shape[0]
    H = W1.shape[2]                      # 2*D
    B = pool.shape[0]
    T = Wp.shape[1]
    Np = _ru(N, 16)                      # bf16 sublane quantum (also covers f32's 8)

    # fold eval-mode BatchNorm into the second linear
    W2f = W2 * bn_scale                                      # (L, H, D)
    b2f = b2 * bn_scale + bn_shift                           # (L, 1, D)

    # eliminate E-sized incidence matmuls; fold the edge aggregate through W1:
    #   C[l] = (A_dst @ e_embs[l]) @ W1[l] + b1[l]
    A = A_dst @ A_src                                        # (N, N)
    EA = jnp.einsum('ne,led->lnd', A_dst, e_embs)            # (L, N, D)
    C = jnp.einsum('lnd,ldh->lnh', EA, W1) + b1              # (L, N, H) f32

    h0p = _pad_to(h0, 0, Np).astype(jnp.bfloat16)            # (Np, D)  bf16
    Ap = _pad_to(_pad_to(A, 0, Np), 1, Np).astype(jnp.bfloat16)  # (Np, Np) bf16
    W1b = W1.astype(jnp.bfloat16)                            # (L, D, H) bf16
    W2b = W2f.astype(jnp.bfloat16)                           # (L, H, D) bf16

    # packed per-layer f32 additive terms: rows [0,Np) = C, row Np = b2' (lanes [0,D))
    b2blk = _pad_to(_pad_to(b2f, 1, 8), 2, H)                # (L, 8, H) f32
    lcb = jnp.concatenate([_pad_to(C, 1, Np), b2blk], axis=1)  # (L, Np+8, H) f32

    # packed readout + predict head (all f32; sections start on sublane multiples of 8)
    PR = _ru(B, 8)
    Wh = max(Np, T)
    head = jnp.zeros((PR + D + 8, Wh), jnp.float32)
    head = head.at[:B, :N].set(pool)                         # mean-pool weights (1/|V_g|)
    head = head.at[PR:PR + D, :T].set(Wp)
    head = head.at[PR + D, :T].set(bp[0])

    arrays = (h0p, Ap, W1b, W2b, lcb, head)
    meta = dict(n_layers=L, n_pad=Np, d=D, hid=H, b=B, t=T, pool_rows=PR)
    return arrays, meta


def run_gin_kernel(arrays, meta):
    h0p, Ap, W1b, W2b, lcb, head = arrays
    L, Np, D, H = meta['n_layers'], meta['n_pad'], meta['d'], meta['hid']
    B, T, PR = meta['b'], meta['t'], meta['pool_rows']

    flops = (L * (2 * Np * Np * D + 2 * Np * D * H + 2 * Np * H * D)
             + 2 * B * Np * D + 2 * B * D * T)
    bytes_accessed = (sum(int(np.prod(x.shape)) * x.dtype.itemsize for x in arrays)
                      + B * T * 4)

    kernel = functools.partial(_gin_kernel, n_layers=L, n_pad=Np, d=D,
                               b=B, t=T, pool_rows=PR)
    return pl.pallas_call(
        kernel,
        out_shape=jax.ShapeDtypeStruct((B, T), jnp.float32),
        in_specs=[pl.BlockSpec(memory_space=pltpu.MemorySpace.VMEM)] * 6,
        out_specs=pl.BlockSpec(memory_space=pltpu.MemorySpace.VMEM),
        compiler_params=pltpu.CompilerParams(
            vmem_limit_bytes=4 * 1024 * 1024),   # actual residency ~40 KiB + headroom
        cost_estimate=pl.CostEstimate(flops=flops, transcendentals=0,
                                      bytes_accessed=bytes_accessed),
    )(h0p, Ap, W1b, W2b, lcb, head)


@jax.jit
def gin_predictor_forward(h0, A_src, A_dst, e_embs, W1, b1, W2, b2,
                          bn_scale, bn_shift, pool, Wp, bp):
    arrays, meta = prepare_inputs(h0, A_src, A_dst, e_embs, W1, b1, W2, b2,
                                  bn_scale, bn_shift, pool, Wp, bp)
    return run_gin_kernel(arrays, meta)


# -----------------------------------------------------------------------------
# References.
#   reference_forward : original (un-folded) semantics in f32.
#   bf16_reference    : mirrors the kernel's folded math + bf16 casts exactly.
# -----------------------------------------------------------------------------
def reference_forward(h0, A_src, A_dst, e_embs, W1, b1, W2, b2,
                      bn_scale, bn_shift, pool, Wp, bp):
    L = e_embs.shape[0]
    h = h0
    for l in range(L):
        msg = A_src @ h + e_embs[l]
        agg = A_dst @ msg
        hid = jax.nn.relu(agg @ W1[l] + b1[l])
        new_h = hid @ W2[l] + b2[l]
        new_h = new_h * bn_scale[l] + bn_shift[l]
        if l < L - 1:
            new_h = jax.nn.relu(new_h)
        h = new_h
    g = pool @ h
    return g @ Wp + bp


def bf16_reference(arrays, meta):
    h0p, Ap, W1b, W2b, lcb, head = arrays
    L, Np, D = meta['n_layers'], meta['n_pad'], meta['d']
    B, T, PR = meta['b'], meta['t'], meta['pool_rows']
    h = h0p
    for l in range(L):
        cl = lcb[l]
        agg = jnp.dot(Ap, h, preferred_element_type=jnp.float32)
        hid = jnp.maximum(jnp.dot(agg.astype(jnp.bfloat16), W1b[l],
                                  preferred_element_type=jnp.float32) + cl[:Np], 0.0)
        new_h = (jnp.dot(hid.astype(jnp.bfloat16), W2b[l],
                         preferred_element_type=jnp.float32)
                 + cl[Np:Np + 1, :D])
        if l < L - 1:
            new_h = jnp.maximum(new_h, 0.0)
        h = new_h.astype(jnp.bfloat16)
    pool = head[:B, :Np]
    wp = head[PR:PR + D, :T]
    bp = head[PR + D:PR + D + 1, :T]
    g = jnp.dot(pool, h.astype(jnp.float32), preferred_element_type=jnp.float32)
    return jnp.dot(g, wp, preferred_element_type=jnp.float32) + bp


# -----------------------------------------------------------------------------
# Parameter / input construction (deterministic, synthetic).
# -----------------------------------------------------------------------------
def _uniform(key, shape, scale):
    return jax.random.uniform(key, shape, jnp.float32, -scale, scale)


if __name__ == "__main__":
    # Module hyper-parameters (small, consistent with the PyTorch module)
    num_node_emb_list = [10, 4]     # e.g. atom types, chirality
    num_edge_emb_list = [6, 3]      # e.g. bond types, bond directions
    num_layers = 3                  # >= 2
    emb_dim = 32
    n_tasks = 1
    bn_eps = 1e-5

    # Batch of B=2 graphs, 4 nodes each (N=8), bidirectional 4-cycles (E=16)
    B, N = 2, 8
    src = np.array([0, 1, 2, 3, 1, 2, 3, 0, 4, 5, 6, 7, 5, 6, 7, 4], np.int32)
    dst = np.array([1, 2, 3, 0, 0, 1, 2, 3, 5, 6, 7, 4, 4, 5, 6, 7], np.int32)
    graph_ids = np.array([0, 0, 0, 0, 1, 1, 1, 1], np.int32)
    E = src.shape[0]

    key = jax.random.PRNGKey(0)
    keys = jax.random.split(key, 16)

    # Categorical features
    node_feat0 = jax.random.randint(keys[0], (N,), 0, num_node_emb_list[0])
    node_feat1 = jax.random.randint(keys[1], (N,), 0, num_node_emb_list[1])
    edge_feat0 = jax.random.randint(keys[2], (E,), 0, num_edge_emb_list[0])
    edge_feat1 = jax.random.randint(keys[3], (E,), 0, num_edge_emb_list[1])

    # Node embedding tables and initial node feats (glue gather)
    ne_scale = float(np.sqrt(6.0 / (max(num_node_emb_list) + emb_dim)))
    node_tab0 = _uniform(keys[4], (num_node_emb_list[0], emb_dim), ne_scale)
    node_tab1 = _uniform(keys[5], (num_node_emb_list[1], emb_dim), ne_scale)
    h0 = node_tab0[node_feat0] + node_tab1[node_feat1]                       # (N, D)

    # Per-layer parameters, stacked along layer axis
    e_embs, W1, b1, W2, b2 = [], [], [], [], []
    layer_keys = jax.random.split(keys[6], num_layers)
    for l in range(num_layers):
        lk = jax.random.split(layer_keys[l], 6)
        ee_scale = float(np.sqrt(6.0 / (max(num_edge_emb_list) + emb_dim)))
        edge_tab0 = _uniform(lk[0], (num_edge_emb_list[0], emb_dim), ee_scale)
        edge_tab1 = _uniform(lk[1], (num_edge_emb_list[1], emb_dim), ee_scale)
        e_embs.append(edge_tab0[edge_feat0] + edge_tab1[edge_feat1])          # (E, D)
        W1.append(_uniform(lk[2], (emb_dim, 2 * emb_dim), 1.0 / np.sqrt(emb_dim)))
        b1.append(_uniform(lk[3], (1, 2 * emb_dim), 1.0 / np.sqrt(emb_dim)))
        W2.append(_uniform(lk[4], (2 * emb_dim, emb_dim), 1.0 / np.sqrt(2 * emb_dim)))
        b2.append(_uniform(lk[5], (1, emb_dim), 1.0 / np.sqrt(2 * emb_dim)))
    e_embs = jnp.stack(e_embs)                   # (L, E, D)
    W1 = jnp.stack(W1)                           # (L, D, 2D)
    b1 = jnp.stack(b1)                           # (L, 1, 2D)
    W2 = jnp.stack(W2)                           # (L, 2D, D)
    b2 = jnp.stack(b2)                           # (L, 1, D)

    # BatchNorm1d at init, eval mode: gamma=1, beta=0, mean=0, var=1
    bn_scale = jnp.full((num_layers, 1, emb_dim), 1.0 / np.sqrt(1.0 + bn_eps),
                        jnp.float32)
    bn_shift = jnp.zeros((num_layers, 1, emb_dim), jnp.float32)

    # Dense graph operators
    A_src = jax.nn.one_hot(src, N, dtype=jnp.float32)                        # (E, N)
    A_dst = jax.nn.one_hot(dst, N, dtype=jnp.float32).T                      # (N, E)
    member = jax.nn.one_hot(graph_ids, B, dtype=jnp.float32).T               # (B, N)
    counts = member.sum(axis=1, keepdims=True)
    pool = member / counts                                                    # mean pooling

    # Prediction head
    Wp = _uniform(keys[7], (emb_dim, n_tasks), 1.0 / np.sqrt(emb_dim))
    bp = _uniform(keys[8], (1, n_tasks), 1.0 / np.sqrt(emb_dim))

    # Run Pallas kernel
    out = gin_predictor_forward(h0, A_src, A_dst, e_embs, W1, b1, W2, b2,
                                bn_scale, bn_shift, pool, Wp, bp)
    out = jax.block_until_ready(out)

    # Tight check against a reference mirroring the kernel math (folded + bf16 operands)
    arrays, meta = prepare_inputs(h0, A_src, A_dst, e_embs, W1, b1, W2, b2,
                                  bn_scale, bn_shift, pool, Wp, bp)
    ref_bf16 = jax.block_until_ready(bf16_reference(arrays, meta))
    np.testing.assert_allclose(np.asarray(out), np.asarray(ref_bf16),
                               rtol=1e-2, atol=2e-3)

    # Looser check against the original (un-folded, f32) semantics
    ref_f32 = jax.block_until_ready(
        reference_forward(h0, A_src, A_dst, e_embs, W1, b1, W2, b2,
                          bn_scale, bn_shift, pool, Wp, bp))
    assert out.shape == (B, n_tasks), out.shape
    np.testing.assert_allclose(np.asarray(out), np.asarray(ref_f32),
                               rtol=3e-2, atol=3e-2)
    print("KERNEL_OK")
</pallas_src>

<mosaic_0001>
module attributes {stable_mosaic.version = 11 : i64} {
  func.func @_gin_kernel(%arg0: memref<16x32xbf16, #tpu.memory_space<vmem>>, %arg1: memref<16x16xbf16, #tpu.memory_space<vmem>>, %arg2: memref<3x32x64xbf16, #tpu.memory_space<vmem>>, %arg3: memref<3x64x32xbf16, #tpu.memory_space<vmem>>, %arg4: memref<3x24x64xf32, #tpu.memory_space<vmem>>, %arg5: memref<48x16xf32, #tpu.memory_space<vmem>>, %arg6: memref<2x1xf32, #tpu.memory_space<vmem>>) attributes {dimension_semantics = [], scalar_prefetch = 0 : i64, scratch_operands = 0 : i64, tpu.core_type = #tpu.core_type<tc>} {
    %c0 = arith.constant 0 : index
    %c0_0 = arith.constant 0 : index
    %0 = vector.load %arg1[%c0, %c0_0] : memref<16x16xbf16, #tpu.memory_space<vmem>>, vector<16x16xbf16>
    %c0_1 = arith.constant 0 : index
    %c0_2 = arith.constant 0 : index
    %1 = vector.load %arg0[%c0_1, %c0_2] : memref<16x32xbf16, #tpu.memory_space<vmem>>, vector<16x32xbf16>
    %c0_3 = arith.constant 0 : index
    %c0_4 = arith.constant 0 : index
    %c0_5 = arith.constant 0 : index
    %2 = vector.load %arg4[%c0_3, %c0_4, %c0_5] : memref<3x24x64xf32, #tpu.memory_space<vmem>>, vector<1x24x64xf32>
    %3 = vector.shape_cast %2 : vector<1x24x64xf32> to vector<24x64xf32>
    %cst = arith.constant dense<0.000000e+00> : vector<16x32xf32>
    %4 = tpu.matmul %0, %1, %cst {dimension_numbers = #tpu.dot_dimension_numbers<[1], [0], [0], [1], [0, 0, 1, 1], [], []>} : vector<16x16xbf16>, vector<16x32xbf16>, vector<16x32xf32> -> vector<16x32xf32>
    %5 = arith.truncf %4 : vector<16x32xf32> to vector<16x32xbf16>
    %c0_6 = arith.constant 0 : index
    %c0_7 = arith.constant 0 : index
    %c0_8 = arith.constant 0 : index
    %6 = vector.load %arg2[%c0_6, %c0_7, %c0_8] : memref<3x32x64xbf16, #tpu.memory_space<vmem>>, vector<1x32x64xbf16>
    %7 = vector.shape_cast %6 : vector<1x32x64xbf16> to vector<32x64xbf16>
    %cst_9 = arith.constant dense<0.000000e+00> : vector<16x64xf32>
    %8 = tpu.matmul %5, %7, %cst_9 {dimension_numbers = #tpu.dot_dimension_numbers<[1], [0], [0], [1], [0, 0, 1, 1], [], []>} : vector<16x32xbf16>, vector<32x64xbf16>, vector<16x64xf32> -> vector<16x64xf32>
    %9 = vector.extract_strided_slice %3 {offsets = [0, 0], sizes = [16, 64], strides = [1, 1]} : vector<24x64xf32> to vector<16x64xf32>
    %10 = arith.addf %8, %9 : vector<16x64xf32>
    %cst_10 = arith.constant 0.000000e+00 : f32
    %11 = vector.broadcast %cst_10 : f32 to vector<16x64xf32>
    %12 = arith.maximumf %10, %11 : vector<16x64xf32>
    %13 = arith.truncf %12 : vector<16x64xf32> to vector<16x64xbf16>
    %c0_11 = arith.constant 0 : index
    %c0_12 = arith.constant 0 : index
    %c0_13 = arith.constant 0 : index
    %14 = vector.load %arg3[%c0_11, %c0_12, %c0_13] : memref<3x64x32xbf16, #tpu.memory_space<vmem>>, vector<1x64x32xbf16>
    %15 = vector.shape_cast %14 : vector<1x64x32xbf16> to vector<64x32xbf16>
    %cst_14 = arith.constant dense<0.000000e+00> : vector<16x32xf32>
    %16 = tpu.matmul %13, %15, %cst_14 {dimension_numbers = #tpu.dot_dimension_numbers<[1], [0], [0], [1], [0, 0, 1, 1], [], []>} : vector<16x64xbf16>, vector<64x32xbf16>, vector<16x32xf32> -> vector<16x32xf32>
    %17 = vector.extract_strided_slice %3 {offsets = [16, 0], sizes = [1, 32], strides = [1, 1]} : vector<24x64xf32> to vector<1x32xf32>
    %18 = vector.broadcast %17 : vector<1x32xf32> to vector<16x32xf32>
    %19 = arith.addf %16, %18 : vector<16x32xf32>
    %cst_15 = arith.constant 0.000000e+00 : f32
    %20 = vector.broadcast %cst_15 : f32 to vector<16x32xf32>
    %21 = arith.maximumf %19, %20 : vector<16x32xf32>
    %22 = arith.truncf %21 : vector<16x32xf32> to vector<16x32xbf16>
    %c1 = arith.constant 1 : index
    %c0_16 = arith.constant 0 : index
    %c0_17 = arith.constant 0 : index
    %23 = vector.load %arg4[%c1, %c0_16, %c0_17] : memref<3x24x64xf32, #tpu.memory_space<vmem>>, vector<1x24x64xf32>
    %24 = vector.shape_cast %23 : vector<1x24x64xf32> to vector<24x64xf32>
    %cst_18 = arith.constant dense<0.000000e+00> : vector<16x32xf32>
    %25 = tpu.matmul %0, %22, %cst_18 {dimension_numbers = #tpu.dot_dimension_numbers<[1], [0], [0], [1], [0, 0, 1, 1], [], []>} : vector<16x16xbf16>, vector<16x32xbf16>, vector<16x32xf32> -> vector<16x32xf32>
    %26 = arith.truncf %25 : vector<16x32xf32> to vector<16x32xbf16>
    %c1_19 = arith.constant 1 : index
    %c0_20 = arith.constant 0 : index
    %c0_21 = arith.constant 0 : index
    %27 = vector.load %arg2[%c1_19, %c0_20, %c0_21] : memref<3x32x64xbf16, #tpu.memory_space<vmem>>, vector<1x32x64xbf16>
    %28 = vector.shape_cast %27 : vector<1x32x64xbf16> to vector<32x64xbf16>
    %cst_22 = arith.constant dense<0.000000e+00> : vector<16x64xf32>
    %29 = tpu.matmul %26, %28, %cst_22 {dimension_numbers = #tpu.dot_dimension_numbers<[1], [0], [0], [1], [0, 0, 1, 1], [], []>} : vector<16x32xbf16>, vector<32x64xbf16>, vector<16x64xf32> -> vector<16x64xf32>
    %30 = vector.extract_strided_slice %24 {offsets = [0, 0], sizes = [16, 64], strides = [1, 1]} : vector<24x64xf32> to vector<16x64xf32>
    %31 = arith.addf %29, %30 : vector<16x64xf32>
    %cst_23 = arith.constant 0.000000e+00 : f32
    %32 = vector.broadcast %cst_23 : f32 to vector<16x64xf32>
    %33 = arith.maximumf %31, %32 : vector<16x64xf32>
    %34 = arith.truncf %33 : vector<16x64xf32> to vector<16x64xbf16>
    %c1_24 = arith.constant 1 : index
    %c0_25 = arith.constant 0 : index
    %c0_26 = arith.constant 0 : index
    %35 = vector.load %arg3[%c1_24, %c0_25, %c0_26] : memref<3x64x32xbf16, #tpu.memory_space<vmem>>, vector<1x64x32xbf16>
    %36 = vector.shape_cast %35 : vector<1x64x32xbf16> to vector<64x32xbf16>
    %cst_27 = arith.constant dense<0.000000e+00> : vector<16x32xf32>
    %37 = tpu.matmul %34, %36, %cst_27 {dimension_numbers = #tpu.dot_dimension_numbers<[1], [0], [0], [1], [0, 0, 1, 1], [], []>} : vector<16x64xbf16>, vector<64x32xbf16>, vector<16x32xf32> -> vector<16x32xf32>
    %38 = vector.extract_strided_slice %24 {offsets = [16, 0], sizes = [1, 32], strides = [1, 1]} : vector<24x64xf32> to vector<1x32xf32>
    %39 = vector.broadcast %38 : vector<1x32xf32> to vector<16x32xf32>
    %40 = arith.addf %37, %39 : vector<16x32xf32>
    %cst_28 = arith.constant 0.000000e+00 : f32
    %41 = vector.broadcast %cst_28 : f32 to vector<16x32xf32>
    %42 = arith.maximumf %40, %41 : vector<16x32xf32>
    %43 = arith.truncf %42 : vector<16x32xf32> to vector<16x32xbf16>
    %c2 = arith.constant 2 : index
    %c0_29 = arith.constant 0 : index
    %c0_30 = arith.constant 0 : index
    %44 = vector.load %arg4[%c2, %c0_29, %c0_30] : memref<3x24x64xf32, #tpu.memory_space<vmem>>, vector<1x24x64xf32>
    %45 = vector.shape_cast %44 : vector<1x24x64xf32> to vector<24x64xf32>
    %cst_31 = arith.constant dense<0.000000e+00> : vector<16x32xf32>
    %46 = tpu.matmul %0, %43, %cst_31 {dimension_numbers = #tpu.dot_dimension_numbers<[1], [0], [0], [1], [0, 0, 1, 1], [], []>} : vector<16x16xbf16>, vector<16x32xbf16>, vector<16x32xf32> -> vector<16x32xf32>
    %47 = arith.truncf %46 : vector<16x32xf32> to vector<16x32xbf16>
    %c2_32 = arith.constant 2 : index
    %c0_33 = arith.constant 0 : index
    %c0_34 = arith.constant 0 : index
    %48 = vector.load %arg2[%c2_32, %c0_33, %c0_34] : memref<3x32x64xbf16, #tpu.memory_space<vmem>>, vector<1x32x64xbf16>
    %49 = vector.shape_cast %48 : vector<1x32x64xbf16> to vector<32x64xbf16>
    %cst_35 = arith.constant dense<0.000000e+00> : vector<16x64xf32>
    %50 = tpu.matmul %47, %49, %cst_35 {dimension_numbers = #tpu.dot_dimension_numbers<[1], [0], [0], [1], [0, 0, 1, 1], [], []>} : vector<16x32xbf16>, vector<32x64xbf16>, vector<16x64xf32> -> vector<16x64xf32>
    %51 = vector.extract_strided_slice %45 {offsets = [0, 0], sizes = [16, 64], strides = [1, 1]} : vector<24x64xf32> to vector<16x64xf32>
    %52 = arith.addf %50, %51 : vector<16x64xf32>
    %cst_36 = arith.constant 0.000000e+00 : f32
    %53 = vector.broadcast %cst_36 : f32 to vector<16x64xf32>
    %54 = arith.maximumf %52, %53 : vector<16x64xf32>
    %55 = arith.truncf %54 : vector<16x64xf32> to vector<16x64xbf16>
    %c2_37 = arith.constant 2 : index
    %c0_38 = arith.constant 0 : index
    %c0_39 = arith.constant 0 : index
    %56 = vector.load %arg3[%c2_37, %c0_38, %c0_39] : memref<3x64x32xbf16, #tpu.memory_space<vmem>>, vector<1x64x32xbf16>
    %57 = vector.shape_cast %56 : vector<1x64x32xbf16> to vector<64x32xbf16>
    %cst_40 = arith.constant dense<0.000000e+00> : vector<16x32xf32>
    %58 = tpu.matmul %55, %57, %cst_40 {dimension_numbers = #tpu.dot_dimension_numbers<[1], [0], [0], [1], [0, 0, 1, 1], [], []>} : vector<16x64xbf16>, vector<64x32xbf16>, vector<16x32xf32> -> vector<16x32xf32>
    %59 = vector.extract_strided_slice %45 {offsets = [16, 0], sizes = [1, 32], strides = [1, 1]} : vector<24x64xf32> to vector<1x32xf32>
    %60 = vector.broadcast %59 : vector<1x32xf32> to vector<16x32xf32>
    %61 = arith.addf %58, %60 : vector<16x32xf32>
    %62 = arith.truncf %61 : vector<16x32xf32> to vector<16x32xbf16>
    %c0_41 = arith.constant 0 : index
    %c0_42 = arith.constant 0 : index
    %63 = vector.load %arg5[%c0_41, %c0_42] : memref<48x16xf32, #tpu.memory_space<vmem>>, vector<48x16xf32>
    %64 = vector.extract_strided_slice %63 {offsets = [0, 0], sizes = [2, 16], strides = [1, 1]} : vector<48x16xf32> to vector<2x16xf32>
    %65 = vector.extract_strided_slice %63 {offsets = [8, 0], sizes = [32, 1], strides = [1, 1]} : vector<48x16xf32> to vector<32x1xf32>
    %66 = vector.extract_strided_slice %63 {offsets = [40, 0], sizes = [1, 1], strides = [1, 1]} : vector<48x16xf32> to vector<1x1xf32>
    %67 = arith.extf %62 : vector<16x32xbf16> to vector<16x32xf32>
    %cst_43 = arith.constant dense<0.000000e+00> : vector<2x32xf32>
    %68 = tpu.matmul %64, %67, %cst_43 {dimension_numbers = #tpu.dot_dimension_numbers<[1], [0], [0], [1], [0, 0, 1, 1], [], []>} : vector<2x16xf32>, vector<16x32xf32>, vector<2x32xf32> -> vector<2x32xf32>
    %cst_44 = arith.constant dense<0.000000e+00> : vector<2x1xf32>
    %69 = tpu.matmul %68, %65, %cst_44 {dimension_numbers = #tpu.dot_dimension_numbers<[1], [0], [0], [1], [0, 0, 1, 1], [], []>} : vector<2x32xf32>, vector<32x1xf32>, vector<2x1xf32> -> vector<2x1xf32>
    %70 = vector.broadcast %66 : vector<1x1xf32> to vector<2x1xf32>
    %71 = arith.addf %69, %70 : vector<2x1xf32>
    %c0_45 = arith.constant 0 : index
    %c0_46 = arith.constant 0 : index
    %72 = vector.load %arg6[%c0_45, %c0_46] : memref<2x1xf32, #tpu.memory_space<vmem>>, vector<2x1xf32>
    tpu.vector_store %arg6[%c0_45, %c0_46], %71 {strides = array<i32>} : memref<2x1xf32, #tpu.memory_space<vmem>>, vector<2x1xf32>,
    return
  }
}

</mosaic_0001>

<llo_original>
// kernel: gin_predictor_forward.1
$region0: #{gin_predictor_forward.1}
  #allocation0 [shape = 'u32[]', space=smem, size = 0x4, offset = 0x4, fixed_abs, tag = 'smem constant byte address 0x4 - core index']
  #allocation1 [shape = 'u32[144,128]{1,0:T(1,128)}', space=vmem, size = 0x12000, scoped, tag = 'internal scratch']
  %s0 = inlined_call_operand.vmem [shape: bf16[16,32], index: 0, kind: input, shape index: {}]
  %s1 = inlined_call_operand.vmem [shape: bf16[16,16], index: 1, kind: input, shape index: {}]
  %s2 = inlined_call_operand.vmem [shape: bf16[3,32,64], index: 2, kind: input, shape index: {}]
  %s3 = inlined_call_operand.vmem [shape: bf16[3,64,32], index: 3, kind: input, shape index: {}]
  %s4 = inlined_call_operand.vmem [shape: f32[3,24,64], index: 4, kind: input, shape index: {}]
  %s5 = inlined_call_operand.vmem [shape: f32[48,16], index: 5, kind: input, shape index: {}]
  %s6 = inlined_call_operand.vmem [shape: f32[2,1], index: 6, kind: output, shape index: {}]
  %s7 = sld [smem:[#allocation0]]
  $region34: #{gin_predictor_forward.1} parent=0
    _
  %s9 = ssub.s32 1, %s7
  %s10 = scalar_select 0, %s9, %s7
  // Predicated region
  $region2: #{gin_predictor_forward.1} parent=0 // pred_check
    _
  $region3: #{gin_predictor_forward.1} parent=0 // pred_check_branch
    %12 = sbr.rel (0) target = $region5
  $region4: #{gin_predictor_forward.1} parent=0 // pred_region
    _
  $region5: #{gin_predictor_forward.1} parent=0 // pred_fallthru
    _
  // Predicated region
  $region6: #{gin_predictor_forward.1} parent=0 // pred_check
    _
  $region7: #{gin_predictor_forward.1} parent=0 // pred_check_branch
    %14 = sbr.rel (0) target = $region9
  $region8: #{gin_predictor_forward.1} parent=0 // pred_region
    _
  $region9: #{gin_predictor_forward.1} parent=0 // pred_fallthru
    _
  // Predicated region
  $region10: #{gin_predictor_forward.1} parent=0 // pred_check
    _
  $region11: #{gin_predictor_forward.1} parent=0 // pred_check_branch
    %16 = sbr.rel (0) target = $region13
  $region12: #{gin_predictor_forward.1} parent=0 // pred_region
    _
  $region13: #{gin_predictor_forward.1} parent=0 // pred_fallthru
    _
  // Predicated region
  $region14: #{gin_predictor_forward.1} parent=0 // pred_check
    _
  $region15: #{gin_predictor_forward.1} parent=0 // pred_check_branch
    %18 = sbr.rel (0) target = $region17
  $region16: #{gin_predictor_forward.1} parent=0 // pred_region
    _
  $region17: #{gin_predictor_forward.1} parent=0 // pred_fallthru
    _
  // Predicated region
  $region18: #{gin_predictor_forward.1} parent=0 // pred_check
    _
  $region19: #{gin_predictor_forward.1} parent=0 // pred_check_branch
    %20 = sbr.rel (0) target = $region21
  $region20: #{gin_predictor_forward.1} parent=0 // pred_region
    _
  $region21: #{gin_predictor_forward.1} parent=0 // pred_fallthru
    _
  // Predicated region
  $region22: #{gin_predictor_forward.1} parent=0 // pred_check
    _
  $region23: #{gin_predictor_forward.1} parent=0 // pred_check_branch
    %22 = sbr.rel (0) target = $region25
  $region24: #{gin_predictor_forward.1} parent=0 // pred_region
    _
  $region25: #{gin_predictor_forward.1} parent=0 // pred_fallthru
    _
  %v24 = vld [vmem:[%s1] sm:$0xf]
  %v25 = vld [vmem:[%s1 + $0x4] sm:$0xf]
  %v26 = vld [vmem:[%s0] sm:$0xf]
  %v27 = vld [vmem:[%s0 + $0x4] sm:$0xf]
  %v28 = vld [vmem:[%s4] sm:$0xff]
  %v29 = vld [vmem:[%s4 + $0x8] sm:$0xff]
  %v30 = vld [vmem:[%s4 + $0x10] sm:$0xff]
  %v33 = vunpack.c.l.b16 %v24
  %v34 = vunpack.c.l.b16 %v25
  %v35 = vpack.c.b16 %v34, %v33
  %v38 = vunpack.c.l.b16 %v26
  %v39 = vunpack.c.l.b16 %v27
  %v40 = vpack.c.b16 %v39, %v38
  %vm42 = vcmask 130048
  %v44 = vsel %vm42, %v35, 0
  %46 = vmatprep.subr.bf16.mxu0 0
  %47 = vmatpush1.bf16.msra.mxu0 0
  %48 = vmatprep.subr.bf16.mxu0 0
  %49 = vmatpush1.bf16.msra.mxu0 0
  %50 = vmatprep.subr.bf16.mxu0 0
  %51 = vmatpush1.bf16.msra.mxu0 0
  %52 = vmatprep.subr.bf16.mxu0 0
  %53 = vmatpush1.bf16.msra.mxu0 0
  %54 = vmatprep.subr.bf16.mxu0 0
  %55 = vmatpush1.bf16.msra.mxu0 0
  %56 = vmatprep.subr.bf16.mxu0 0
  %57 = vmatpush1.bf16.msra.mxu0 0
  %58 = vmatprep.subr.bf16.mxu0 0
  %59 = vmatpush1.bf16.msra.mxu0 0
  %60 = vmatprep.subr.bf16.mxu0 0
  %61 = vmatpush1.bf16.msra.mxu0 %v40
  %62 = vmatprep.subr.bf16.mxu0 0
  %63 = vmatpush2.bf16.msra.mxu0 0
  %64 = vmatprep.subr.bf16.mxu0 0
  %65 = vmatpush2.bf16.msra.mxu0 0
  %66 = vmatprep.subr.bf16.mxu0 0
  %67 = vmatpush2.bf16.msra.mxu0 0
  %68 = vmatprep.subr.bf16.mxu0 0
  %69 = vmatpush2.bf16.msra.mxu0 0
  %70 = vmatprep.subr.bf16.mxu0 0
  %71 = vmatpush2.bf16.msra.mxu0 0
  %72 = vmatprep.subr.bf16.mxu0 0
  %73 = vmatpush2.bf16.msra.mxu0 0
  %74 = vmatprep.subr.bf16.mxu0 0
  %75 = vmatpush2.bf16.msra.mxu0 0
  %76 = vmatprep.subr.bf16.mxu0 0
  %77 = vmatpush2.bf16.msra.mxu0 0
  %78 = vmatprep.mubr.bf16.mxu0 0
  %79 = vmatmul.mubr.bf16.gmra.mxu0 %v44
  %v80 = vpop.f32.mrf.mxu0
  %v81 = vadd.f32 0.0, %v80
  %v82 = vpop.f32.mrf.mxu0
  %v83 = vpop.f32.mrf.mxu0
  %v84 = vadd.f32 0.0, %v83
  %v85 = vpop.f32.mrf.mxu0
  %86 = vdwg.mxu0
  %v87 = vpack.c.bf16 %v84, %v81
  %v88 = vld [vmem:[%s2] sm:$0xf]
  %v89 = vld [vmem:[%s2 + $0x4] sm:$0xf]
  %v90 = vld [vmem:[%s2 + $0x8] sm:$0xf]
  %v91 = vld [vmem:[%s2 + $0xc] sm:$0xf]
  %v96 = vunpack.c.l.b16 %v88
  %v97 = vunpack.c.l.b16 %v89
  %v98 = vunpack.c.l.b16 %v90
  %v99 = vunpack.c.l.b16 %v91
  %v100 = vpack.c.b16 %v97, %v96
  %v101 = vpack.c.b16 %v99, %v98
  %vm104 = vcmask 261120
  %v106 = vsel %vm104, %v87, 0
  %108 = vmatprep.subr.bf16.mxu0 0
  %109 = vmatpush1.bf16.msra.mxu0 0
  %110 = vmatprep.subr.bf16.mxu0 0
  %111 = vmatpush1.bf16.msra.mxu0 0
  %112 = vmatprep.subr.bf16.mxu0 0
  %113 = vmatpush1.bf16.msra.mxu0 0
  %114 = vmatprep.subr.bf16.mxu0 0
  %115 = vmatpush1.bf16.msra.mxu0 0
  %116 = vmatprep.subr.bf16.mxu0 0
  %117 = vmatpush1.bf16.msra.mxu0 0
  %118 = vmatprep.subr.bf16.mxu0 0
  %119 = vmatpush1.bf16.msra.mxu0 0
  %120 = vmatprep.subr.bf16.mxu0 0
  %121 = vmatpush1.bf16.msra.mxu0 %v101
  %122 = vmatprep.subr.bf16.mxu0 0
  %123 = vmatpush1.bf16.msra.mxu0 %v100
  %124 = vmatprep.subr.bf16.mxu0 0
  %125 = vmatpush2.bf16.msra.mxu0 0
  %126 = vmatprep.subr.bf16.mxu0 0
  %127 = vmatpush2.bf16.msra.mxu0 0
  %128 = vmatprep.subr.bf16.mxu0 0
  %129 = vmatpush2.bf16.msra.mxu0 0
  %130 = vmatprep.subr.bf16.mxu0 0
  %131 = vmatpush2.bf16.msra.mxu0 0
  %132 = vmatprep.subr.bf16.mxu0 0
  %133 = vmatpush2.bf16.msra.mxu0 0
  %134 = vmatprep.subr.bf16.mxu0 0
  %135 = vmatpush2.bf16.msra.mxu0 0
  %136 = vmatprep.subr.bf16.mxu0 0
  %137 = vmatpush2.bf16.msra.mxu0 0
  %138 = vmatprep.subr.bf16.mxu0 0
  %139 = vmatpush2.bf16.msra.mxu0 0
  %140 = vmatprep.mubr.bf16.mxu0 0
  %141 = vmatmul.mubr.bf16.gmra.mxu0 %v106
  %v142 = vpop.f32.mrf.mxu0
  %v143 = vadd.f32 %v28, %v142
  %v144 = vpop.f32.mrf.mxu0
  %v145 = vpop.f32.mrf.mxu0
  %v146 = vadd.f32 %v29, %v145
  %v147 = vpop.f32.mrf.mxu0
  %148 = vdwg.mxu0
  %v149 = vmax.f32 %v143, 0.0
  %v150 = vmax.f32 %v146, 0.0
  %v151 = vpack.c.bf16 %v150, %v149
  %v152 = vld [vmem:[%s3] sm:$0xf]
  %v153 = vld [vmem:[%s3 + $0x4] sm:$0xf]
  %v154 = vld [vmem:[%s3 + $0x8] sm:$0xf]
  %v155 = vld [vmem:[%s3 + $0xc] sm:$0xf]
  %v156 = vld [vmem:[%s3 + $0x10] sm:$0xf]
  %v157 = vld [vmem:[%s3 + $0x14] sm:$0xf]
  %v158 = vld [vmem:[%s3 + $0x18] sm:$0xf]
  %v159 = vld [vmem:[%s3 + $0x1c] sm:$0xf]
  %v160 = vlaneseq
  %v161 = vshrl.u32 %v160, 7
  %v162 = vsub.s32 0, %v161
  %v163 = vrot.slane %v30, %v162
  %v172 = vunpack.c.l.b16 %v152
  %v173 = vunpack.c.l.b16 %v153
  %v174 = vunpack.c.l.b16 %v154
  %v175 = vunpack.c.l.b16 %v155
  %v176 = vunpack.c.l.b16 %v156
  %v177 = vunpack.c.l.b16 %v157
  %v178 = vunpack.c.l.b16 %v158
  %v179 = vunpack.c.l.b16 %v159
  %v180 = vpack.c.b16 %v173, %v172
  %v181 = vpack.c.b16 %v175, %v174
  %v182 = vpack.c.b16 %v177, %v176
  %v183 = vpack.c.b16 %v179, %v178
  %vm188 = vcmask 523264
  %v190 = vsel %vm188, %v151, 0
  %192 = vmatprep.subr.bf16.mxu0 0
  %193 = vmatpush1.bf16.msra.mxu0 0
  %194 = vmatprep.subr.bf16.mxu0 0
  %195 = vmatpush1.bf16.msra.mxu0 0
  %196 = vmatprep.subr.bf16.mxu0 0
  %197 = vmatpush1.bf16.msra.mxu0 0
  %198 = vmatprep.subr.bf16.mxu0 0
  %199 = vmatpush1.bf16.msra.mxu0 0
  %200 = vmatprep.subr.bf16.mxu0 0
  %201 = vmatpush1.bf16.msra.mxu0 %v183
  %202 = vmatprep.subr.bf16.mxu0 0
  %203 = vmatpush1.bf16.msra.mxu0 %v182
  %204 = vmatprep.subr.bf16.mxu0 0
  %205 = vmatpush1.bf16.msra.mxu0 %v181
  %206 = vmatprep.subr.bf16.mxu0 0
  %207 = vmatpush1.bf16.msra.mxu0 %v180
  %208 = vmatprep.subr.bf16.mxu0 0
  %209 = vmatpush2.bf16.msra.mxu0 0
  %210 = vmatprep.subr.bf16.mxu0 0
  %211 = vmatpush2.bf16.msra.mxu0 0
  %212 = vmatprep.subr.bf16.mxu0 0
  %213 = vmatpush2.bf16.msra.mxu0 0
  %214 = vmatprep.subr.bf16.mxu0 0
  %215 = vmatpush2.bf16.msra.mxu0 0
  %216 = vmatprep.subr.bf16.mxu0 0
  %217 = vmatpush2.bf16.msra.mxu0 0
  %218 = vmatprep.subr.bf16.mxu0 0
  %219 = vmatpush2.bf16.msra.mxu0 0
  %220 = vmatprep.subr.bf16.mxu0 0
  %221 = vmatpush2.bf16.msra.mxu0 0
  %222 = vmatprep.subr.bf16.mxu0 0
  %223 = vmatpush2.bf16.msra.mxu0 0
  %224 = vmatprep.mubr.bf16.mxu0 0
  %225 = vmatmul.mubr.bf16.gmra.mxu0 %v190
  %v226 = vpop.f32.mrf.mxu0
  %v227 = vadd.f32 %v163, %v226
  %v228 = vpop.f32.mrf.mxu0
  %v229 = vpop.f32.mrf.mxu0
  %v230 = vadd.f32 %v163, %v229
  %v231 = vpop.f32.mrf.mxu0
  %232 = vdwg.mxu0
  %v233 = vmax.f32 %v227, 0.0
  %v234 = vmax.f32 %v230, 0.0
  %v235 = vpack.c.bf16 %v234, %v233
  %s236 = scalar_lea.vmem %s4, 24
  %v237 = vld [vmem:[%s236] sm:$0xff]
  %v238 = vld [vmem:[%s236 + $0x8] sm:$0xff]
  %v239 = vld [vmem:[%s236 + $0x10] sm:$0xff]
  %240 = vmatprep.subr.bf16.mxu0 0
  %241 = vmatpush1.bf16.msra.mxu0 0
  %242 = vmatprep.subr.bf16.mxu0 0
  %243 = vmatpush1.bf16.msra.mxu0 0
  %244 = vmatprep.subr.bf16.mxu0 0
  %245 = vmatpush1.bf16.msra.mxu0 0
  %246 = vmatprep.subr.bf16.mxu0 0
  %247 = vmatpush1.bf16.msra.mxu0 0
  %248 = vmatprep.subr.bf16.mxu0 0
  %249 = vmatpush1.bf16.msra.mxu0 0
  %250 = vmatprep.subr.bf16.mxu0 0
  %251 = vmatpush1.bf16.msra.mxu0 0
  %252 = vmatprep.subr.bf16.mxu0 0
  %253 = vmatpush1.bf16.msra.mxu0 0
  %254 = vmatprep.subr.bf16.mxu0 0
  %255 = vmatpush1.bf16.msra.mxu0 %v235
  %256 = vmatprep.subr.bf16.mxu0 0
  %257 = vmatpush2.bf16.msra.mxu0 0
  %258 = vmatprep.subr.bf16.mxu0 0
  %259 = vmatpush2.bf16.msra.mxu0 0
  %260 = vmatprep.subr.bf16.mxu0 0
  %261 = vmatpush2.bf16.msra.mxu0 0
  %262 = vmatprep.subr.bf16.mxu0 0
  %263 = vmatpush2.bf16.msra.mxu0 0
  %264 = vmatprep.subr.bf16.mxu0 0
  %265 = vmatpush2.bf16.msra.mxu0 0
  %266 = vmatprep.subr.bf16.mxu0 0
  %267 = vmatpush2.bf16.msra.mxu0 0
  %268 = vmatprep.subr.bf16.mxu0 0
  %269 = vmatpush2.bf16.msra.mxu0 0
  %270 = vmatprep.subr.bf16.mxu0 0
  %271 = vmatpush2.bf16.msra.mxu0 0
  %272 = vmatprep.mubr.bf16.mxu0 0
  %273 = vmatmul.mubr.bf16.gmra.mxu0 %v44
  %v274 = vpop.f32.mrf.mxu0
  %v275 = vadd.f32 0.0, %v274
  %v276 = vpop.f32.mrf.mxu0
  %v277 = vpop.f32.mrf.mxu0
  %v278 = vadd.f32 0.0, %v277
  %v279 = vpop.f32.mrf.mxu0
  %280 = vdwg.mxu0
  %v281 = vpack.c.bf16 %v278, %v275
  %s282 = scalar_lea.vmem %s2, 16
  %v283 = vld [vmem:[%s282] sm:$0xf]
  %v284 = vld [vmem:[%s282 + $0x4] sm:$0xf]
  %v285 = vld [vmem:[%s282 + $0x8] sm:$0xf]
  %v286 = vld [vmem:[%s282 + $0xc] sm:$0xf]
  %v291 = vunpack.c.l.b16 %v283
  %v292 = vunpack.c.l.b16 %v284
  %v293 = vunpack.c.l.b16 %v285
  %v294 = vunpack.c.l.b16 %v286
  %v295 = vpack.c.b16 %v292, %v291
  %v296 = vpack.c.b16 %v294, %v293
  %v300 = vsel %vm104, %v281, 0
  %302 = vmatprep.subr.bf16.mxu0 0
  %303 = vmatpush1.bf16.msra.mxu0 0
  %304 = vmatprep.subr.bf16.mxu0 0
  %305 = vmatpush1.bf16.msra.mxu0 0
  %306 = vmatprep.subr.bf16.mxu0 0
  %307 = vmatpush1.bf16.msra.mxu0 0
  %308 = vmatprep.subr.bf16.mxu0 0
  %309 = vmatpush1.bf16.msra.mxu0 0
  %310 = vmatprep.subr.bf16.mxu0 0
  %311 = vmatpush1.bf16.msra.mxu0 0
  %312 = vmatprep.subr.bf16.mxu0 0
  %313 = vmatpush1.bf16.msra.mxu0 0
  %314 = vmatprep.subr.bf16.mxu0 0
  %315 = vmatpush1.bf16.msra.mxu0 %v296
  %316 = vmatprep.subr.bf16.mxu0 0
  %317 = vmatpush1.bf16.msra.mxu0 %v295
  %318 = vmatprep.subr.bf16.mxu0 0
  %319 = vmatpush2.bf16.msra.mxu0 0
  %320 = vmatprep.subr.bf16.mxu0 0
  %321 = vmatpush2.bf16.msra.mxu0 0
  %322 = vmatprep.subr.bf16.mxu0 0
  %323 = vmatpush2.bf16.msra.mxu0 0
  %324 = vmatprep.subr.bf16.mxu0 0
  %325 = vmatpush2.bf16.msra.mxu0 0
  %326 = vmatprep.subr.bf16.mxu0 0
  %327 = vmatpush2.bf16.msra.mxu0 0
  %328 = vmatprep.subr.bf16.mxu0 0
  %329 = vmatpush2.bf16.msra.mxu0 0
  %330 = vmatprep.subr.bf16.mxu0 0
  %331 = vmatpush2.bf16.msra.mxu0 0
  %332 = vmatprep.subr.bf16.mxu0 0
  %333 = vmatpush2.bf16.msra.mxu0 0
  %334 = vmatprep.mubr.bf16.mxu0 0
  %335 = vmatmul.mubr.bf16.gmra.mxu0 %v300
  %v336 = vpop.f32.mrf.mxu0
  %v337 = vadd.f32 %v237, %v336
  %v338 = vpop.f32.mrf.mxu0
  %v339 = vpop.f32.mrf.mxu0
  %v340 = vadd.f32 %v238, %v339
  %v341 = vpop.f32.mrf.mxu0
  %342 = vdwg.mxu0
  %v343 = vmax.f32 %v337, 0.0
  %v344 = vmax.f32 %v340, 0.0
  %v345 = vpack.c.bf16 %v344, %v343
  %s346 = scalar_lea.vmem %s3, 32
  %v347 = vld [vmem:[%s346] sm:$0xf]
  %v348 = vld [vmem:[%s346 + $0x4] sm:$0xf]
  %v349 = vld [vmem:[%s346 + $0x8] sm:$0xf]
  %v350 = vld [vmem:[%s346 + $0xc] sm:$0xf]
  %v351 = vld [vmem:[%s346 + $0x10] sm:$0xf]
  %v352 = vld [vmem:[%s346 + $0x14] sm:$0xf]
  %v353 = vld [vmem:[%s346 + $0x18] sm:$0xf]
  %v354 = vld [vmem:[%s346 + $0x1c] sm:$0xf]
  %v355 = vlaneseq
  %v356 = vshrl.u32 %v355, 7
  %v357 = vsub.s32 0, %v356
  %v358 = vrot.slane %v239, %v357
  %v367 = vunpack.c.l.b16 %v347
  %v368 = vunpack.c.l.b16 %v348
  %v369 = vunpack.c.l.b16 %v349
  %v370 = vunpack.c.l.b16 %v350
  %v371 = vunpack.c.l.b16 %v351
  %v372 = vunpack.c.l.b16 %v352
  %v373 = vunpack.c.l.b16 %v353
  %v374 = vunpack.c.l.b16 %v354
  %v375 = vpack.c.b16 %v368, %v367
  %v376 = vpack.c.b16 %v370, %v369
  %v377 = vpack.c.b16 %v372, %v371
  %v378 = vpack.c.b16 %v374, %v373
  %v384 = vsel %vm188, %v345, 0
  %386 = vmatprep.subr.bf16.mxu0 0
  %387 = vmatpush1.bf16.msra.mxu0 0
  %388 = vmatprep.subr.bf16.mxu0 0
  %389 = vmatpush1.bf16.msra.mxu0 0
  %390 = vmatprep.subr.bf16.mxu0 0
  %391 = vmatpush1.bf16.msra.mxu0 0
  %392 = vmatprep.subr.bf16.mxu0 0
  %393 = vmatpush1.bf16.msra.mxu0 0
  %394 = vmatprep.subr.bf16.mxu0 0
  %395 = vmatpush1.bf16.msra.mxu0 %v378
  %396 = vmatprep.subr.bf16.mxu0 0
  %397 = vmatpush1.bf16.msra.mxu0 %v377
  %398 = vmatprep.subr.bf16.mxu0 0
  %399 = vmatpush1.bf16.msra.mxu0 %v376
  %400 = vmatprep.subr.bf16.mxu0 0
  %401 = vmatpush1.bf16.msra.mxu0 %v375
  %402 = vmatprep.subr.bf16.mxu0 0
  %403 = vmatpush2.bf16.msra.mxu0 0
  %404 = vmatprep.subr.bf16.mxu0 0
  %405 = vmatpush2.bf16.msra.mxu0 0
  %406 = vmatprep.subr.bf16.mxu0 0
  %407 = vmatpush2.bf16.msra.mxu0 0
  %408 = vmatprep.subr.bf16.mxu0 0
  %409 = vmatpush2.bf16.msra.mxu0 0
  %410 = vmatprep.subr.bf16.mxu0 0
  %411 = vmatpush2.bf16.msra.mxu0 0
  %412 = vmatprep.subr.bf16.mxu0 0
  %413 = vmatpush2.bf16.msra.mxu0 0
  %414 = vmatprep.subr.bf16.mxu0 0
  %415 = vmatpush2.bf16.msra.mxu0 0
  %416 = vmatprep.subr.bf16.mxu0 0
  %417 = vmatpush2.bf16.msra.mxu0 0
  %418 = vmatprep.mubr.bf16.mxu0 0
  %419 = vmatmul.mubr.bf16.gmra.mxu0 %v384
  %v420 = vpop.f32.mrf.mxu0
  %v421 = vadd.f32 %v358, %v420
  %v422 = vpop.f32.mrf.mxu0
  %v423 = vpop.f32.mrf.mxu0
  %v424 = vadd.f32 %v358, %v423
  %v425 = vpop.f32.mrf.mxu0
  %426 = vdwg.mxu0
  %v427 = vmax.f32 %v421, 0.0
  %v428 = vmax.f32 %v424, 0.0
  %v429 = vpack.c.bf16 %v428, %v427
  %s430 = scalar_lea.vmem %s4, 48
  %v431 = vld [vmem:[%s430] sm:$0xff]
  %v432 = vld [vmem:[%s430 + $0x8] sm:$0xff]
  %v433 = vld [vmem:[%s430 + $0x10] sm:$0xff]
  %434 = vmatprep.subr.bf16.mxu0 0
  %435 = vmatpush1.bf16.msra.mxu0 0
  %436 = vmatprep.subr.bf16.mxu0 0
  %437 = vmatpush1.bf16.msra.mxu0 0
  %438 = vmatprep.subr.bf16.mxu0 0
  %439 = vmatpush1.bf16.msra.mxu0 0
  %440 = vmatprep.subr.bf16.mxu0 0
  %441 = vmatpush1.bf16.msra.mxu0 0
  %442 = vmatprep.subr.bf16.mxu0 0
  %443 = vmatpush1.bf16.msra.mxu0 0
  %444 = vmatprep.subr.bf16.mxu0 0
  %445 = vmatpush1.bf16.msra.mxu0 0
  %446 = vmatprep.subr.bf16.mxu0 0
  %447 = vmatpush1.bf16.msra.mxu0 0
  %448 = vmatprep.subr.bf16.mxu0 0
  %449 = vmatpush1.bf16.msra.mxu0 %v429
  %450 = vmatprep.subr.bf16.mxu0 0
  %451 = vmatpush2.bf16.msra.mxu0 0
  %452 = vmatprep.subr.bf16.mxu0 0
  %453 = vmatpush2.bf16.msra.mxu0 0
  %454 = vmatprep.subr.bf16.mxu0 0
  %455 = vmatpush2.bf16.msra.mxu0 0
  %456 = vmatprep.subr.bf16.mxu0 0
  %457 = vmatpush2.bf16.msra.mxu0 0
  %458 = vmatprep.subr.bf16.mxu0 0
  %459 = vmatpush2.bf16.msra.mxu0 0
  %460 = vmatprep.subr.bf16.mxu0 0
  %461 = vmatpush2.bf16.msra.mxu0 0
  %462 = vmatprep.subr.bf16.mxu0 0
  %463 = vmatpush2.bf16.msra.mxu0 0
  %464 = vmatprep.subr.bf16.mxu0 0
  %465 = vmatpush2.bf16.msra.mxu0 0
  %466 = vmatprep.mubr.bf16.mxu0 0
  %467 = vmatmul.mubr.bf16.gmra.mxu0 %v44
  %v468 = vpop.f32.mrf.mxu0
  %v469 = vadd.f32 0.0, %v468
  %v470 = vpop.f32.mrf.mxu0
  %v471 = vpop.f32.mrf.mxu0
  %v472 = vadd.f32 0.0, %v471
  %v473 = vpop.f32.mrf.mxu0
  %474 = vdwg.mxu0
  %v475 = vpack.c.bf16 %v472, %v469
  %s476 = scalar_lea.vmem %s2, 32
  %v477 = vld [vmem:[%s476] sm:$0xf]
  %v478 = vld [vmem:[%s476 + $0x4] sm:$0xf]
  %v479 = vld [vmem:[%s476 + $0x8] sm:$0xf]
  %v480 = vld [vmem:[%s476 + $0xc] sm:$0xf]
  %v485 = vunpack.c.l.b16 %v477
  %v486 = vunpack.c.l.b16 %v478
  %v487 = vunpack.c.l.b16 %v479
  %v488 = vunpack.c.l.b16 %v480
  %v489 = vpack.c.b16 %v486, %v485
  %v490 = vpack.c.b16 %v488, %v487
  %v494 = vsel %vm104, %v475, 0
  %496 = vmatprep.subr.bf16.mxu0 0
  %497 = vmatpush1.bf16.msra.mxu0 0
  %498 = vmatprep.subr.bf16.mxu0 0
  %499 = vmatpush1.bf16.msra.mxu0 0
  %500 = vmatprep.subr.bf16.mxu0 0
  %501 = vmatpush1.bf16.msra.mxu0 0
  %502 = vmatprep.subr.bf16.mxu0 0
  %503 = vmatpush1.bf16.msra.mxu0 0
  %504 = vmatprep.subr.bf16.mxu0 0
  %505 = vmatpush1.bf16.msra.mxu0 0
  %506 = vmatprep.subr.bf16.mxu0 0
  %507 = vmatpush1.bf16.msra.mxu0 0
  %508 = vmatprep.subr.bf16.mxu0 0
  %509 = vmatpush1.bf16.msra.mxu0 %v490
  %510 = vmatprep.subr.bf16.mxu0 0
  %511 = vmatpush1.bf16.msra.mxu0 %v489
  %512 = vmatprep.subr.bf16.mxu0 0
  %513 = vmatpush2.bf16.msra.mxu0 0
  %514 = vmatprep.subr.bf16.mxu0 0
  %515 = vmatpush2.bf16.msra.mxu0 0
  %516 = vmatprep.subr.bf16.mxu0 0
  %517 = vmatpush2.bf16.msra.mxu0 0
  %518 = vmatprep.subr.bf16.mxu0 0
  %519 = vmatpush2.bf16.msra.mxu0 0
  %520 = vmatprep.subr.bf16.mxu0 0
  %521 = vmatpush2.bf16.msra.mxu0 0
  %522 = vmatprep.subr.bf16.mxu0 0
  %523 = vmatpush2.bf16.msra.mxu0 0
  %524 = vmatprep.subr.bf16.mxu0 0
  %525 = vmatpush2.bf16.msra.mxu0 0
  %526 = vmatprep.subr.bf16.mxu0 0
  %527 = vmatpush2.bf16.msra.mxu0 0
  %528 = vmatprep.mubr.bf16.mxu0 0
  %529 = vmatmul.mubr.bf16.gmra.mxu0 %v494
  %v530 = vpop.f32.mrf.mxu0
  %v531 = vadd.f32 %v431, %v530
  %v532 = vpop.f32.mrf.mxu0
  %v533 = vpop.f32.mrf.mxu0
  %v534 = vadd.f32 %v432, %v533
  %v535 = vpop.f32.mrf.mxu0
  %536 = vdwg.mxu0
  %v537 = vmax.f32 %v531, 0.0
  %v538 = vmax.f32 %v534, 0.0
  %v539 = vpack.c.bf16 %v538, %v537
  %s540 = scalar_lea.vmem %s3, 64
  %v541 = vld [vmem:[%s540] sm:$0xf]
  %v542 = vld [vmem:[%s540 + $0x4] sm:$0xf]
  %v543 = vld [vmem:[%s540 + $0x8] sm:$0xf]
  %v544 = vld [vmem:[%s540 + $0xc] sm:$0xf]
  %v545 = vld [vmem:[%s540 + $0x10] sm:$0xf]
  %v546 = vld [vmem:[%s540 + $0x14] sm:$0xf]
  %v547 = vld [vmem:[%s540 + $0x18] sm:$0xf]
  %v548 = vld [vmem:[%s540 + $0x1c] sm:$0xf]
  %v549 = vlaneseq
  %v550 = vshrl.u32 %v549, 7
  %v551 = vsub.s32 0, %v550
  %v552 = vrot.slane %v433, %v551
  %v561 = vunpack.c.l.b16 %v541
  %v562 = vunpack.c.l.b16 %v542
  %v563 = vunpack.c.l.b16 %v543
  %v564 = vunpack.c.l.b16 %v544
  %v565 = vunpack.c.l.b16 %v545
  %v566 = vunpack.c.l.b16 %v546
  %v567 = vunpack.c.l.b16 %v547
  %v568 = vunpack.c.l.b16 %v548
  %v569 = vpack.c.b16 %v562, %v561
  %v570 = vpack.c.b16 %v564, %v563
  %v571 = vpack.c.b16 %v566, %v565
  %v572 = vpack.c.b16 %v568, %v567
  %v578 = vsel %vm188, %v539, 0
  %580 = vmatprep.subr.bf16.mxu0 0
  %581 = vmatpush1.bf16.msra.mxu0 0
  %582 = vmatprep.subr.bf16.mxu0 0
  %583 = vmatpush1.bf16.msra.mxu0 0
  %584 = vmatprep.subr.bf16.mxu0 0
  %585 = vmatpush1.bf16.msra.mxu0 0
  %586 = vmatprep.subr.bf16.mxu0 0
  %587 = vmatpush1.bf16.msra.mxu0 0
  %588 = vmatprep.subr.bf16.mxu0 0
  %589 = vmatpush1.bf16.msra.mxu0 %v572
  %590 = vmatprep.subr.bf16.mxu0 0
  %591 = vmatpush1.bf16.msra.mxu0 %v571
  %592 = vmatprep.subr.bf16.mxu0 0
  %593 = vmatpush1.bf16.msra.mxu0 %v570
  %594 = vmatprep.subr.bf16.mxu0 0
  %595 = vmatpush1.bf16.msra.mxu0 %v569
  %596 = vmatprep.subr.bf16.mxu0 0
  %597 = vmatpush2.bf16.msra.mxu0 0
  %598 = vmatprep.subr.bf16.mxu0 0
  %599 = vmatpush2.bf16.msra.mxu0 0
  %600 = vmatprep.subr.bf16.mxu0 0
  %601 = vmatpush2.bf16.msra.mxu0 0
  %602 = vmatprep.subr.bf16.mxu0 0
  %603 = vmatpush2.bf16.msra.mxu0 0
  %604 = vmatprep.subr.bf16.mxu0 0
  %605 = vmatpush2.bf16.msra.mxu0 0
  %606 = vmatprep.subr.bf16.mxu0 0
  %607 = vmatpush2.bf16.msra.mxu0 0
  %608 = vmatprep.subr.bf16.mxu0 0
  %609 = vmatpush2.bf16.msra.mxu0 0
  %610 = vmatprep.subr.bf16.mxu0 0
  %611 = vmatpush2.bf16.msra.mxu0 0
  %612 = vmatprep.mubr.bf16.mxu0 0
  %613 = vmatmul.mubr.bf16.gmra.mxu0 %v578
  %v614 = vpop.f32.mrf.mxu0
  %v615 = vadd.f32 %v552, %v614
  %v616 = vpop.f32.mrf.mxu0
  %v617 = vpop.f32.mrf.mxu0
  %v618 = vadd.f32 %v552, %v617
  %v619 = vpop.f32.mrf.mxu0
  %620 = vdwg.mxu0
  %v621 = vpack.c.bf16 %v618, %v615
  %v622 = vld [vmem:[%s5] sm:$0xff]
  %v623 = vld [vmem:[%s5 + $0x8] sm:$0xff]
  %v624 = vld [vmem:[%s5 + $0x10] sm:$0xff]
  %v625 = vld [vmem:[%s5 + $0x18] sm:$0xff]
  %v626 = vld [vmem:[%s5 + $0x20] sm:$0xff]
  %v627 = vld [vmem:[%s5 + $0x28] sm:$0xff]
  %v628 = vunpack.c.l.bf16 %v621
  %v629 = vunpack.c.h.bf16 %v621
  %v631 = vsel %vm42, %v622, 0
  %633 = vmatprep.subr.mxu0 0.0
  %634 = vmatpush1.msra.mxu0 0.0
  %635 = vmatprep.subr.mxu0 0.0
  %636 = vmatpush1.msra.mxu0 0.0
  %637 = vmatprep.subr.mxu0 0.0
  %638 = vmatpush1.msra.mxu0 0.0
  %639 = vmatprep.subr.mxu0 0.0
  %640 = vmatpush1.msra.mxu0 0.0
  %641 = vmatprep.subr.mxu0 0.0
  %642 = vmatpush1.msra.mxu0 0.0
  %643 = vmatprep.subr.mxu0 0.0
  %644 = vmatpush1.msra.mxu0 0.0
  %645 = vmatprep.subr.mxu0 0.0
  %646 = vmatpush1.msra.mxu0 0.0
  %647 = vmatprep.subr.mxu0 0.0
  %648 = vmatpush1.msra.mxu0 0.0
  %649 = vmatprep.subr.mxu0 0.0
  %650 = vmatpush1.msra.mxu0 0.0
  %651 = vmatprep.subr.mxu0 0.0
  %652 = vmatpush1.msra.mxu0 0.0
  %653 = vmatprep.subr.mxu0 0.0
  %654 = vmatpush1.msra.mxu0 0.0
  %655 = vmatprep.subr.mxu0 0.0
  %656 = vmatpush1.msra.mxu0 0.0
  %657 = vmatprep.subr.mxu0 0.0
  %658 = vmatpush1.msra.mxu0 0.0
  %659 = vmatprep.subr.mxu0 0.0
  %660 = vmatpush1.msra.mxu0 0.0
  %661 = vmatprep.subr.mxu0 0.0
  %662 = vmatpush1.msra.mxu0 %v629
  %663 = vmatprep.subr.mxu0 0.0
  %664 = vmatpush1.msra.mxu0 %v628
  %665 = vmatprep.subr.mxu0 0.0
  %666 = vmatpush2.msra.mxu0 0.0
  %667 = vmatprep.subr.mxu0 0.0
  %668 = vmatpush2.msra.mxu0 0.0
  %669 = vmatprep.subr.mxu0 0.0
  %670 = vmatpush2.msra.mxu0 0.0
  %671 = vmatprep.subr.mxu0 0.0
  %672 = vmatpush2.msra.mxu0 0.0
  %673 = vmatprep.subr.mxu0 0.0
  %674 = vmatpush2.msra.mxu0 0.0
  %675 = vmatprep.subr.mxu0 0.0
  %676 = vmatpush2.msra.mxu0 0.0
  %677 = vmatprep.subr.mxu0 0.0
  %678 = vmatpush2.msra.mxu0 0.0
  %679 = vmatprep.subr.mxu0 0.0
  %680 = vmatpush2.msra.mxu0 0.0
  %681 = vmatprep.subr.mxu0 0.0
  %682 = vmatpush2.msra.mxu0 0.0
  %683 = vmatprep.subr.mxu0 0.0
  %684 = vmatpush2.msra.mxu0 0.0
  %685 = vmatprep.subr.mxu0 0.0
  %686 = vmatpush2.msra.mxu0 0.0
  %687 = vmatprep.subr.mxu0 0.0
  %688 = vmatpush2.msra.mxu0 0.0
  %689 = vmatprep.subr.mxu0 0.0
  %690 = vmatpush2.msra.mxu0 0.0
  %691 = vmatprep.subr.mxu0 0.0
  %692 = vmatpush2.msra.mxu0 0.0
  %693 = vmatprep.subr.mxu0 0.0
  %694 = vmatpush2.msra.mxu0 0.0
  %695 = vmatprep.subr.mxu0 0.0
  %696 = vmatpush2.msra.mxu0 0.0
  %697 = vmatprep.mubr.f32.mxu0 0.0
  %698 = vmatmul.mubr.f32.gmra.mxu0 %v631
  %v699 = vpop.f32.mrf.mxu0
  %v700 = vadd.f32 0.0, %v699
  %v701 = vpop.f32.mrf.mxu0
  %702 = vdwg.mxu0
  %v703 = vlaneseq
  %v704 = vshrl.u32 %v703, 7
  %v705 = vsub.s32 0, %v704
  %v706 = vrot.slane %v627, %v705
  %v708 = vsel %vm104, %v700, 0
  %710 = vmatprep.subr.mxu0 0.0
  %711 = vmatpush1.msra.mxu0 0.0
  %712 = vmatprep.subr.mxu0 0.0
  %713 = vmatpush1.msra.mxu0 0.0
  %714 = vmatprep.subr.mxu0 0.0
  %715 = vmatpush1.msra.mxu0 0.0
  %716 = vmatprep.subr.mxu0 0.0
  %717 = vmatpush1.msra.mxu0 0.0
  %718 = vmatprep.subr.mxu0 0.0
  %719 = vmatpush1.msra.mxu0 0.0
  %720 = vmatprep.subr.mxu0 0.0
  %721 = vmatpush1.msra.mxu0 0.0
  %722 = vmatprep.subr.mxu0 0.0
  %723 = vmatpush1.msra.mxu0 0.0
  %724 = vmatprep.subr.mxu0 0.0
  %725 = vmatpush1.msra.mxu0 0.0
  %726 = vmatprep.subr.mxu0 0.0
  %727 = vmatpush1.msra.mxu0 0.0
  %728 = vmatprep.subr.mxu0 0.0
  %729 = vmatpush1.msra.mxu0 0.0
  %730 = vmatprep.subr.mxu0 0.0
  %731 = vmatpush1.msra.mxu0 0.0
  %732 = vmatprep.subr.mxu0 0.0
  %733 = vmatpush1.msra.mxu0 0.0
  %734 = vmatprep.subr.mxu0 0.0
  %735 = vmatpush1.msra.mxu0 %v626
  %736 = vmatprep.subr.mxu0 0.0
  %737 = vmatpush1.msra.mxu0 %v625
  %738 = vmatprep.subr.mxu0 0.0
  %739 = vmatpush1.msra.mxu0 %v624
  %740 = vmatprep.subr.mxu0 0.0
  %741 = vmatpush1.msra.mxu0 %v623
  %742 = vmatprep.subr.mxu0 0.0
  %743 = vmatpush2.msra.mxu0 0.0
  %744 = vmatprep.subr.mxu0 0.0
  %745 = vmatpush2.msra.mxu0 0.0
  %746 = vmatprep.subr.mxu0 0.0
  %747 = vmatpush2.msra.mxu0 0.0
  %748 = vmatprep.subr.mxu0 0.0
  %749 = vmatpush2.msra.mxu0 0.0
  %750 = vmatprep.subr.mxu0 0.0
  %751 = vmatpush2.msra.mxu0 0.0
  %752 = vmatprep.subr.mxu0 0.0
  %753 = vmatpush2.msra.mxu0 0.0
  %754 = vmatprep.subr.mxu0 0.0
  %755 = vmatpush2.msra.mxu0 0.0
  %756 = vmatprep.subr.mxu0 0.0
  %757 = vmatpush2.msra.mxu0 0.0
  %758 = vmatprep.subr.mxu0 0.0
  %759 = vmatpush2.msra.mxu0 0.0
  %760 = vmatprep.subr.mxu0 0.0
  %761 = vmatpush2.msra.mxu0 0.0
  %762 = vmatprep.subr.mxu0 0.0
  %763 = vmatpush2.msra.mxu0 0.0
  %764 = vmatprep.subr.mxu0 0.0
  %765 = vmatpush2.msra.mxu0 0.0
  %766 = vmatprep.subr.mxu0 0.0
  %767 = vmatpush2.msra.mxu0 0.0
  %768 = vmatprep.subr.mxu0 0.0
  %769 = vmatpush2.msra.mxu0 0.0
  %770 = vmatprep.subr.mxu0 0.0
  %771 = vmatpush2.msra.mxu0 0.0
  %772 = vmatprep.subr.mxu0 0.0
  %773 = vmatpush2.msra.mxu0 0.0
  %774 = vmatprep.mubr.f32.mxu0 0.0
  %775 = vmatmul.mubr.f32.gmra.mxu0 %v708
  %v776 = vpop.f32.mrf.mxu0
  %v777 = vadd.f32 %v706, %v776
  %v778 = vpop.f32.mrf.mxu0
  %779 = vdwg.mxu0
  %vm780 = vcmask 1024
  %781 = vst.msk [vmem:[%s6] sm:$0x3] %vm780, %v777
  // Predicated region
  $region26: #{gin_predictor_forward.1} parent=0 // pred_check
    _
  $region27: #{gin_predictor_forward.1} parent=0 // pred_check_branch
    %783 = sbr.rel (0) target = $region29
  $region28: #{gin_predictor_forward.1} parent=0 // pred_region
    _
  $region29: #{gin_predictor_forward.1} parent=0 // pred_fallthru
    _
  // Predicated region
  $region30: #{gin_predictor_forward.1} parent=0 // pred_check
    _
  $region31: #{gin_predictor_forward.1} parent=0 // pred_check_branch
    %785 = sbr.rel (0) target = $region33
  $region32: #{gin_predictor_forward.1} parent=0 // pred_region
    _
  $region33: #{gin_predictor_forward.1} parent=0 // pred_fallthru
    _

</llo_original>
